<compile_context>
chip_gen: v6e
topology: v6e:2x2x1
jax: 0.10.0
libtpu: 0.0.40
codegen_flags: <defaults>
</compile_context>

<pallas_src>
import functools

import jax
import jax.numpy as jnp
from jax.experimental import pallas as pl
from jax.experimental.pallas import tpu as pltpu


# ---------------------------------------------------------------------------
# Kernels
# ---------------------------------------------------------------------------

def _energy_kernel_resident(x_ref, w1_ref, b1_ref, w2r_ref, o_ref, *, compute_dtype):
    # (tb, D) @ (D, H) on the MXU with f32 accumulation.  x is cast on the
    # loaded tile (avoids materializing a cast copy of x in HBM).
    x = x_ref[...].astype(compute_dtype)
    h = jnp.dot(x, w1_ref[...], preferred_element_type=jnp.float32)
    h = jnp.maximum(h + b1_ref[...], 0.0)              # bias + ReLU on the VPU
    # H -> 1 projection off the MXU: VPU multiply + XLU lane reduction.
    e = jnp.sum(h * w2r_ref[...], axis=-1)             # (tb,)
    # Lane-dense (1, tb) store; tb is a multiple of 128 -> unmasked vst.
    o_ref[...] = e.reshape(1, -1).astype(o_ref.dtype)


def _energy_kernel_ktiled(x_ref, w1_ref, b1_ref, w2r_ref, o_ref, acc_ref, *,
                          compute_dtype):
    # K-tiled variant: stream W1 in (tk, H) slabs, accumulate (tb, H) in f32.
    k = pl.program_id(1)

    @pl.when(k == 0)
    def _init():
        acc_ref[...] = jnp.zeros_like(acc_ref)

    x = x_ref[...].astype(compute_dtype)
    acc_ref[...] += jnp.dot(x, w1_ref[...], preferred_element_type=jnp.float32)

    @pl.when(k == pl.num_programs(1) - 1)
    def _finalize():
        h = jnp.maximum(acc_ref[...] + b1_ref[...], 0.0)
        e = jnp.sum(h * w2r_ref[...], axis=-1)
        o_ref[...] = e.reshape(1, -1).astype(o_ref.dtype)


# ---------------------------------------------------------------------------
# Wrapper
# ---------------------------------------------------------------------------

def _round_up(n, m):
    return ((n + m - 1) // m) * m


def _choose_tile(total, preferred):
    """Largest multiple of 128 (<= preferred) that divides `total` (itself a
    multiple of 128), preferring >= 2 grid steps (v7x megacore)."""
    n128 = total // 128
    best = 128
    for mult in range(1, n128 + 1):
        t = mult * 128
        if t > preferred:
            break
        if n128 % mult == 0 and (n128 // mult >= 2 or n128 == 1):
            best = t
    return best


def _vmem_capacity_bytes():
    # Generation-aware VMEM capacity (v5e/v6e: 128 MiB, v7x: 64 MiB per TC).
    try:
        return int(pltpu.get_tpu_info().vmem_capacity_bytes)
    except Exception:
        return 64 << 20   # most conservative (v7x) if the query is unavailable


def energy_forward(x, w1, b1, w2, b2, *, compute_dtype=None, preferred_tb=512,
                   preferred_tk=512, force_k_tiling=False):
    """Pallas implementation of Energy(net).forward(x) = relu(x@W1+b1)@w2 + b2."""
    B, D = x.shape
    H = w1.shape[1]
    assert w1.shape == (D, H)
    b1 = jnp.asarray(b1).reshape(1, H).astype(jnp.float32)
    w2r = jnp.asarray(w2).reshape(1, H).astype(jnp.float32)   # row for lane reduction
    b2 = jnp.asarray(b2).reshape(1, 1)

    # Default is PyTorch-parity dtype (f32); bf16 MXU path is an explicit opt-in.
    if compute_dtype is None:
        compute_dtype = jnp.promote_types(x.dtype, w1.dtype)
    compute_dtype = jnp.dtype(compute_dtype)
    w1c = w1.astype(compute_dtype)

    x_item = jnp.dtype(x.dtype).itemsize
    cd_item = compute_dtype.itemsize
    Dp_est = _round_up(D, 128)       # lane-padded sizes, VMEM estimates only
    Hp_est = _round_up(H, 128)

    vmem_cap = _vmem_capacity_bytes()
    vmem_hard_cap = int(vmem_cap * 0.8)        # ~51 MiB v7x, ~102 MiB v5e/v6e

    # --- adaptive batch tile (keep double-buffered x tile within ~1/3 of cap) ---
    Bp = _round_up(B, 128)
    max_tb = max(128, ((vmem_hard_cap // 3) // (2 * Dp_est * x_item)) // 128 * 128)
    tb = _choose_tile(Bp, min(preferred_tb, max_tb))
    if Bp != B:
        # Minimal zero-pad of the batch (no-op when B % 128 == 0). Padded rows
        # produce junk energies that are sliced off below.
        x = jnp.pad(x, ((0, Bp - B), (0, 0)))
    grid_b = Bp // tb

    resident_bytes = (2 * tb * Dp_est * x_item      # double-buffered x tile
                      + Dp_est * Hp_est * cd_item   # resident W1 (single buffer)
                      + 2 * Hp_est * 4              # b1, w2 row
                      + 2 * tb * 4)                 # (1, tb) output row
    use_ktiling = force_k_tiling or resident_bytes > int(vmem_hard_cap * 0.75)

    cost = pl.CostEstimate(
        flops=int(2.0 * Bp * D * H + 3.0 * Bp * H),
        transcendentals=0,
        bytes_accessed=int(Bp * D * x_item + D * H * cd_item + 2 * H * 4 + Bp * 4),
    )

    if not use_ktiling:
        vmem_limit = int(min(resident_bytes + (8 << 20), vmem_hard_cap))
        kernel = functools.partial(_energy_kernel_resident, compute_dtype=compute_dtype)
        out_row = pl.pallas_call(
            kernel,
            out_shape=jax.ShapeDtypeStruct((1, Bp), jnp.float32),
            grid_spec=pltpu.PrefetchScalarGridSpec(
                num_scalar_prefetch=0,
                grid=(grid_b,),
                in_specs=[
                    pl.BlockSpec((tb, D), lambda i: (i, 0)),        # streaming x tile
                    pl.BlockSpec((D, H), lambda i: (0, 0),
                                 pipeline_mode=pl.Buffered(1)),     # resident W1
                    pl.BlockSpec((1, H), lambda i: (0, 0),
                                 pipeline_mode=pl.Buffered(1)),     # resident b1
                    pl.BlockSpec((1, H), lambda i: (0, 0),
                                 pipeline_mode=pl.Buffered(1)),     # resident w2 row
                ],
                out_specs=pl.BlockSpec((1, tb), lambda i: (0, i)),  # lane-dense energies
            ),
            compiler_params=pltpu.CompilerParams(
                dimension_semantics=("parallel",),
                vmem_limit_bytes=vmem_limit,
            ),
            cost_estimate=cost,
        )(x, w1c, b1, w2r)
    else:
        # K-tiled reduction over D (resident W1 would not fit VMEM, e.g. large
        # D*H on v7x's 64 MiB).  Reduction axis is last and "arbitrary".
        Dk = _round_up(D, 128)
        tk = _choose_tile(Dk, preferred_tk)
        if Dk != D:
            x = jnp.pad(x, ((0, 0), (0, Dk - D)))
            w1c = jnp.pad(w1c, ((0, Dk - D), (0, 0)))
        grid_k = Dk // tk

        ktiled_bytes = (2 * tb * tk * x_item + 2 * tk * Hp_est * cd_item
                        + tb * Hp_est * 4 + 2 * Hp_est * 4 + 2 * tb * 4)
        vmem_limit = int(min(ktiled_bytes + (8 << 20), vmem_hard_cap))
        # TODO(synk): for extreme H (accumulator / W1 slab alone exceeding VMEM)
        # add a third grid axis tiling H as well.

        kernel = functools.partial(_energy_kernel_ktiled, compute_dtype=compute_dtype)
        out_row = pl.pallas_call(
            kernel,
            out_shape=jax.ShapeDtypeStruct((1, Bp), jnp.float32),
            grid_spec=pltpu.PrefetchScalarGridSpec(
                num_scalar_prefetch=0,
                grid=(grid_b, grid_k),
                in_specs=[
                    pl.BlockSpec((tb, tk), lambda i, k: (i, k)),    # x tile
                    pl.BlockSpec((tk, H), lambda i, k: (k, 0)),     # streaming W1 slab
                    pl.BlockSpec((1, H), lambda i, k: (0, 0),
                                 pipeline_mode=pl.Buffered(1)),     # resident b1
                    pl.BlockSpec((1, H), lambda i, k: (0, 0),
                                 pipeline_mode=pl.Buffered(1)),     # resident w2 row
                ],
                out_specs=pl.BlockSpec((1, tb), lambda i, k: (0, i)),
                scratch_shapes=[pltpu.VMEM((tb, H), jnp.float32)],  # f32 accumulator
            ),
            compiler_params=pltpu.CompilerParams(
                dimension_semantics=("parallel", "arbitrary"),
                vmem_limit_bytes=vmem_limit,
            ),
            cost_estimate=cost,
        )(x, w1c, b1, w2r)

    # b2 added outside the kernel; slice away the batch padding.
    return out_row.reshape(Bp, 1)[:B] + b2


def reference_forward(x, w1, b1, w2, b2):
    h = jnp.maximum(x @ w1 + jnp.asarray(b1).reshape(1, -1), 0.0)
    return h @ jnp.asarray(w2).reshape(-1, 1) + jnp.asarray(b2).reshape(1, 1)


# TODO(synk): Energy.score (autograd of -net(x).sum() w.r.t. x) is a backward
# pass through `net`; only forward() is kernelized here.

if __name__ == "__main__":
    key = jax.random.PRNGKey(0)
    k_x, k_w1, k_b1, k_w2, k_b2 = jax.random.split(key, 5)

    # Deliberately unaligned small shapes to exercise the no-feature-pad and
    # batch-pad paths (B=200 -> padded to 256 -> 2 parallel grid steps).
    B, D, H = 200, 96, 80
    x = jax.random.normal(k_x, (B, D), dtype=jnp.float32)
    w1 = jax.random.normal(k_w1, (D, H), dtype=jnp.float32) * (1.0 / jnp.sqrt(D * 1.0))
    b1 = jax.random.normal(k_b1, (H,), dtype=jnp.float32) * 0.01
    w2 = jax.random.normal(k_w2, (H, 1), dtype=jnp.float32) * (1.0 / jnp.sqrt(H * 1.0))
    b2 = jax.random.normal(k_b2, (1,), dtype=jnp.float32) * 0.01

    ref = reference_forward(x, w1, b1, w2, b2)

    # Default f32 path (PyTorch parity, tight tolerance).
    fwd_f32 = jax.jit(energy_forward)
    out_f32 = jax.block_until_ready(fwd_f32(x, w1, b1, w2, b2))
    assert out_f32.shape == (B, 1)
    assert jnp.allclose(out_f32, ref, atol=1e-5, rtol=1e-5), "f32 mismatch vs reference"

    # bf16-MXU opt-in path (f32 accumulation; tolerance loosened for bf16 rounding).
    fwd_bf16 = jax.jit(functools.partial(energy_forward, compute_dtype=jnp.bfloat16))
    out_bf16 = jax.block_until_ready(fwd_bf16(x, w1, b1, w2, b2))
    assert out_bf16.shape == (B, 1)
    assert jnp.allclose(out_bf16, ref, atol=5e-2, rtol=5e-2), "bf16 mismatch vs reference"

    # K-tiled reduction path (the large-D*H / v7x configuration), forced at a
    # small aligned shape so both the init and finalize pl.when branches run.
    B2, D2, H2 = 256, 256, 128
    x2 = jax.random.normal(k_x, (B2, D2), dtype=jnp.float32)
    w1_2 = jax.random.normal(k_w1, (D2, H2), dtype=jnp.float32) * (1.0 / jnp.sqrt(D2 * 1.0))
    b1_2 = jax.random.normal(k_b1, (H2,), dtype=jnp.float32) * 0.01
    w2_2 = jax.random.normal(k_w2, (H2, 1), dtype=jnp.float32) * (1.0 / jnp.sqrt(H2 * 1.0))
    b2_2 = jax.random.normal(k_b2, (1,), dtype=jnp.float32) * 0.01
    ref2 = reference_forward(x2, w1_2, b1_2, w2_2, b2_2)

    fwd_kt = jax.jit(functools.partial(energy_forward, force_k_tiling=True,
                                       preferred_tk=128))
    out_kt = jax.block_until_ready(fwd_kt(x2, w1_2, b1_2, w2_2, b2_2))
    assert out_kt.shape == (B2, 1)
    assert jnp.allclose(out_kt, ref2, atol=1e-5, rtol=1e-5), "k-tiled mismatch vs reference"

    print("KERNEL_OK")
</pallas_src>

<mosaic_0001>
module attributes {stable_mosaic.version = 11 : i64} {
  func.func @_energy_kernel_resident(%arg0: i32, %arg1: memref<128x96xf32, #tpu.memory_space<vmem>>, %arg2: memref<96x80xf32, #tpu.memory_space<vmem>>, %arg3: memref<1x80xf32, #tpu.memory_space<vmem>>, %arg4: memref<1x80xf32, #tpu.memory_space<vmem>>, %arg5: memref<1x128xf32, #tpu.memory_space<vmem>>) attributes {dimension_semantics = [#tpu.dimension_semantics<parallel>], iteration_bounds = array<i64: 2>, scalar_prefetch = 0 : i64, scratch_operands = 0 : i64, tpu.core_type = #tpu.core_type<tc>, window_params = [{transform_indices = @transform_0, window_bounds = array<i64: 128, 96>}, {pipeline_mode = #tpu.pipeline_mode<synchronous>, transform_indices = @transform_1, window_bounds = array<i64: 96, 80>}, {pipeline_mode = #tpu.pipeline_mode<synchronous>, transform_indices = @transform_2, window_bounds = array<i64: 1, 80>}, {pipeline_mode = #tpu.pipeline_mode<synchronous>, transform_indices = @transform_3, window_bounds = array<i64: 1, 80>}, {transform_indices = @transform_4, window_bounds = array<i64: 1, 128>}]} {
    %c0 = arith.constant 0 : index
    %c0_0 = arith.constant 0 : index
    %0 = vector.load %arg1[%c0, %c0_0] : memref<128x96xf32, #tpu.memory_space<vmem>>, vector<128x96xf32>
    %c0_1 = arith.constant 0 : index
    %c0_2 = arith.constant 0 : index
    %1 = vector.load %arg2[%c0_1, %c0_2] : memref<96x80xf32, #tpu.memory_space<vmem>>, vector<96x80xf32>
    %cst = arith.constant dense<0.000000e+00> : vector<128x80xf32>
    %2 = tpu.matmul %0, %1, %cst {dimension_numbers = #tpu.dot_dimension_numbers<[1], [0], [0], [1], [0, 0, 1, 1], [], []>} : vector<128x96xf32>, vector<96x80xf32>, vector<128x80xf32> -> vector<128x80xf32>
    %c0_3 = arith.constant 0 : index
    %c0_4 = arith.constant 0 : index
    %3 = vector.load %arg3[%c0_3, %c0_4] : memref<1x80xf32, #tpu.memory_space<vmem>>, vector<1x80xf32>
    %4 = vector.broadcast %3 : vector<1x80xf32> to vector<128x80xf32>
    %5 = arith.addf %2, %4 : vector<128x80xf32>
    %cst_5 = arith.constant 0.000000e+00 : f32
    %6 = vector.broadcast %cst_5 : f32 to vector<128x80xf32>
    %7 = arith.maximumf %5, %6 : vector<128x80xf32>
    %c0_6 = arith.constant 0 : index
    %c0_7 = arith.constant 0 : index
    %8 = vector.load %arg4[%c0_6, %c0_7] : memref<1x80xf32, #tpu.memory_space<vmem>>, vector<1x80xf32>
    %9 = vector.broadcast %8 : vector<1x80xf32> to vector<128x80xf32>
    %10 = arith.mulf %7, %9 : vector<128x80xf32>
    %cst_8 = arith.constant dense<0.000000e+00> : vector<128xf32>
    %11 = vector.multi_reduction <add>, %10, %cst_8 [1] : vector<128x80xf32> to vector<128xf32>
    %12 = vector.shape_cast %11 : vector<128xf32> to vector<1x128xf32>
    %c0_9 = arith.constant 0 : index
    %c0_10 = arith.constant 0 : index
    %13 = vector.load %arg5[%c0_9, %c0_10] : memref<1x128xf32, #tpu.memory_space<vmem>>, vector<1x128xf32>
    tpu.vector_store %arg5[%c0_9, %c0_10], %12 {strides = array<i32>} : memref<1x128xf32, #tpu.memory_space<vmem>>, vector<1x128xf32>,
    return
  }
  func.func @transform_0(%arg0: i32) -> (i32, i32) {
    %c0_i32 = arith.constant 0 : i32
    %c0_i32_0 = arith.constant 0 : i32
    return %arg0, %c0_i32 : i32, i32
  }
  func.func @transform_1(%arg0: i32) -> (i32, i32) {
    %c0_i32 = arith.constant 0 : i32
    %c0_i32_0 = arith.constant 0 : i32
    %c0_i32_1 = arith.constant 0 : i32
    return %c0_i32, %c0_i32_0 : i32, i32
  }
  func.func @transform_2(%arg0: i32) -> (i32, i32) {
    %c0_i32 = arith.constant 0 : i32
    %c0_i32_0 = arith.constant 0 : i32
    %c0_i32_1 = arith.constant 0 : i32
    return %c0_i32, %c0_i32_0 : i32, i32
  }
  func.func @transform_3(%arg0: i32) -> (i32, i32) {
    %c0_i32 = arith.constant 0 : i32
    %c0_i32_0 = arith.constant 0 : i32
    %c0_i32_1 = arith.constant 0 : i32
    return %c0_i32, %c0_i32_0 : i32, i32
  }
  func.func @transform_4(%arg0: i32) -> (i32, i32) {
    %c0_i32 = arith.constant 0 : i32
    %c0_i32_0 = arith.constant 0 : i32
    return %c0_i32, %arg0 : i32, i32
  }
}

</mosaic_0001>

<llo_original>
// kernel: energy_forward.1
$region0: #{energy_forward.1}
  #allocation0 [shape = 'u32[]', space=smem, size = 0x4, offset = 0x4, fixed_abs, tag = 'smem constant byte address 0x4 - core index']
  #allocation1 [shape = 'u32[144,128]{1,0:T(1,128)}', space=vmem, size = 0x12000, scoped, tag = 'internal scratch']
  %s0 = inlined_call_operand.vmem [shape: f32[256,96], index: 0, kind: input, shape index: {}]
  %s1 = inlined_call_operand.vmem [shape: f32[96,80], index: 1, kind: input, shape index: {}]
  %s2 = inlined_call_operand.vmem [shape: f32[1,80], index: 2, kind: input, shape index: {}]
  %s3 = inlined_call_operand.vmem [shape: f32[1,80], index: 3, kind: input, shape index: {}]
  %s4 = inlined_call_operand.vmem [shape: f32[1,256], index: 4, kind: output, shape index: {}]
  %s5 = sld [smem:[#allocation0]]
  $region49: #{energy_forward.1} parent=0
    _
  %s7 = ssub.s32 1, %s5
  %s8 = scalar_select 0, %s7, %s5
  loop: start=0, step=1, limit=4
  $region2: #{energy_forward.1} parent=0 // loop_pre_header
    _
  $region3: #{energy_forward.1} parent=0 // loop_header
    %s10 = sphi 0, %s14
    %p11 = scmp.ge.s32.totalorder %s10, 4
    %s20 = sphi 0, %s22
    %s23 = sphi 0, %s20
    %s24 = sphi 0, %s23
    %s40 = sphi 0, %s24
    %s44 = sphi 0, %s44
    %s46 = sphi 0, %s44
    %s47 = sphi 0, %s46
    %s61 = sphi 0, %s47
    %s65 = sphi 0, %s65
    %s67 = sphi 0, %s65
    %s68 = sphi 0, %s67
    %s82 = sphi 0, %s68
    %s86 = sphi 0, %s86
    %s88 = sphi 0, %s86
    %s89 = sphi 0, %s88
    %s103 = sphi 0, %s89
    %s109 = sphi 0, %s111
    %s112 = sphi 0, %s109
    %s113 = sphi 0, %s112
    %s129 = sphi 0, %s113
  $region4: #{energy_forward.1} parent=0 // loop_header_branch
    %13 = sbr.rel (%p11) target = $region8
  $region5: #{energy_forward.1} parent=0 // loop_body
    %s15 = ssub.s32 %s10, 1
    %s16 = ssub.s32 %s10, 2
    %s17 = sadd.s32 %s10, 1
    %s18 = ssub.s32 %s10, %s17
    %p19 = scmp.eq.s32.totalorder %s18, 0
    %s21 = sadd.s32 %s20, 1
    %s22 = scalar_select %p19, %s20, %s21
    %p25 = pneg %p19
    %p26 = scmp.eq.s32.totalorder %s10, 1
    %p27 = por %p25, %p26
    %p28 = scmp.ne.s32.totalorder %s20, %s23
    %p29 = scmp.eq.s32.totalorder %s10, 0
    %p30 = por %p28, %p29
    %p31 = scmp.ne.s32.totalorder %s20, %s23
    %p32 = scmp.eq.s32.totalorder %s15, 1
    %p33 = por %p31, %p32
    %p34 = scmp.ne.s32.totalorder %s23, %s24
    %p35 = scmp.eq.s32.totalorder %s15, 0
    %p36 = por %p34, %p35
    %p37 = scmp.ne.s32.totalorder %s23, %s24
    %p38 = scmp.eq.s32.totalorder %s16, 1
    %p39 = por %p37, %p38
    %p41 = scmp.ne.s32.totalorder %s24, %s40
    %p42 = scmp.eq.s32.totalorder %s16, 0
    %p43 = por %p41, %p42
    %s45 = sadd.s32 %s44, 1
    %p48 = scmp.eq.s32.totalorder %s10, 1
    %p49 = scmp.ne.s32.totalorder %s44, %s46
    %p50 = scmp.eq.s32.totalorder %s10, 0
    %p51 = por %p49, %p50
    %p52 = scmp.ne.s32.totalorder %s44, %s46
    %p53 = scmp.eq.s32.totalorder %s15, 1
    %p54 = por %p52, %p53
    %p55 = scmp.ne.s32.totalorder %s46, %s47
    %p56 = scmp.eq.s32.totalorder %s15, 0
    %p57 = por %p55, %p56
    %p58 = scmp.ne.s32.totalorder %s46, %s47
    %p59 = scmp.eq.s32.totalorder %s16, 1
    %p60 = por %p58, %p59
    %p62 = scmp.ne.s32.totalorder %s47, %s61
    %p63 = scmp.eq.s32.totalorder %s16, 0
    %p64 = por %p62, %p63
    %s66 = sadd.s32 %s65, 1
    %p69 = scmp.eq.s32.totalorder %s10, 1
    %p70 = scmp.ne.s32.totalorder %s65, %s67
    %p71 = scmp.eq.s32.totalorder %s10, 0
    %p72 = por %p70, %p71
    %p73 = scmp.ne.s32.totalorder %s65, %s67
    %p74 = scmp.eq.s32.totalorder %s15, 1
    %p75 = por %p73, %p74
    %p76 = scmp.ne.s32.totalorder %s67, %s68
    %p77 = scmp.eq.s32.totalorder %s15, 0
    %p78 = por %p76, %p77
    %p79 = scmp.ne.s32.totalorder %s67, %s68
    %p80 = scmp.eq.s32.totalorder %s16, 1
    %p81 = por %p79, %p80
    %p83 = scmp.ne.s32.totalorder %s68, %s82
    %p84 = scmp.eq.s32.totalorder %s16, 0
    %p85 = por %p83, %p84
    %s87 = sadd.s32 %s86, 1
    %p90 = scmp.eq.s32.totalorder %s10, 1
    %p91 = scmp.ne.s32.totalorder %s86, %s88
    %p92 = scmp.eq.s32.totalorder %s10, 0
    %p93 = por %p91, %p92
    %p94 = scmp.ne.s32.totalorder %s86, %s88
    %p95 = scmp.eq.s32.totalorder %s15, 1
    %p96 = por %p94, %p95
    %p97 = scmp.ne.s32.totalorder %s88, %s89
    %p98 = scmp.eq.s32.totalorder %s15, 0
    %p99 = por %p97, %p98
    %p100 = scmp.ne.s32.totalorder %s88, %s89
    %p101 = scmp.eq.s32.totalorder %s16, 1
    %p102 = por %p100, %p101
    %p104 = scmp.ne.s32.totalorder %s89, %s103
    %p105 = scmp.eq.s32.totalorder %s16, 0
    %p106 = por %p104, %p105
    %s107 = ssub.s32 %s10, %s17
    %p108 = scmp.eq.s32.totalorder %s107, 0
    %s110 = sadd.s32 %s109, 1
    %s111 = scalar_select %p108, %s109, %s110
    %p114 = pneg %p108
    %p115 = scmp.eq.s32.totalorder %s10, 1
    %p116 = por %p114, %p115
    %p117 = scmp.ne.s32.totalorder %s109, %s112
    %p118 = scmp.eq.s32.totalorder %s10, 0
    %p119 = por %p117, %p118
    %p120 = scmp.ne.s32.totalorder %s109, %s112
    %p121 = scmp.eq.s32.totalorder %s15, 1
    %p122 = por %p120, %p121
    %p123 = scmp.ne.s32.totalorder %s112, %s113
    %p124 = scmp.eq.s32.totalorder %s15, 0
    %p125 = por %p123, %p124
    %p126 = scmp.ne.s32.totalorder %s112, %s113
    %p127 = scmp.eq.s32.totalorder %s16, 1
    %p128 = por %p126, %p127
    %p130 = scmp.ne.s32.totalorder %s113, %s129
    %p131 = scmp.eq.s32.totalorder %s16, 0
    %p132 = por %p130, %p131
    %p133 = scmp.le.s32.totalorder 1, %s10
    %p134 = scmp.lt.s32.totalorder %s10, 3
    %p135 = pnand %p133, %p134
    %p136 = pneg %p135
    // Predicated region
    $region9: #{energy_forward.1} parent=5 // pred_check
      _
    $region10: #{energy_forward.1} parent=5 // pred_check_branch
      %138 = sbr.rel (%p135) target = $region12
    $region11: #{energy_forward.1} parent=5 // pred_region
      %s139 = ssub.s32 %s10, 1
      // Predicated region
      $region13: #{energy_forward.1} parent=11 // pred_check
        %p140 = pneg %p57
      $region14: #{energy_forward.1} parent=11 // pred_check_branch
        %142 = sbr.rel (%p140) target = $region16
      $region15: #{energy_forward.1} parent=11 // pred_region
        _
      $region16: #{energy_forward.1} parent=11 // pred_fallthru
        _
      // Predicated region
      $region17: #{energy_forward.1} parent=11 // pred_check
        %p143 = pneg %p78
      $region18: #{energy_forward.1} parent=11 // pred_check_branch
        %145 = sbr.rel (%p143) target = $region20
      $region19: #{energy_forward.1} parent=11 // pred_region
        _
      $region20: #{energy_forward.1} parent=11 // pred_fallthru
        _
      // Predicated region
      $region21: #{energy_forward.1} parent=11 // pred_check
        %p146 = pneg %p99
      $region22: #{energy_forward.1} parent=11 // pred_check_branch
        %148 = sbr.rel (%p146) target = $region24
      $region23: #{energy_forward.1} parent=11 // pred_region
        _
      $region24: #{energy_forward.1} parent=11 // pred_fallthru
        _
    $region12: #{energy_forward.1} parent=5 // pred_fallthru
      _
    %p149 = scmp.lt.s32.totalorder %s10, 2
    // Predicated region
    $region25: #{energy_forward.1} parent=5 // pred_check
      %p150 = pneg %p149
    $region26: #{energy_forward.1} parent=5 // pred_check_branch
      %152 = sbr.rel (%p150) target = $region28
    $region27: #{energy_forward.1} parent=5 // pred_region
      // Predicated region
      $region29: #{energy_forward.1} parent=27 // pred_check
        %p153 = pneg %p30
      $region30: #{energy_forward.1} parent=27 // pred_check_branch
        %155 = sbr.rel (%p153) target = $region32
      $region31: #{energy_forward.1} parent=27 // pred_region
        %s156 = smul.u32 16, %s10
        %p157 = scmp.lt.s32.totalorder %s156, 31
        %s158 = scalar_select %p157, %s156, 31
        %s159 = smul.addr %s158, 8
        %s160 = scalar_lea.vmem %s0, %s159
        %s161 = smul.u32 16, %s10
      $region32: #{energy_forward.1} parent=27 // pred_fallthru
        _
    $region28: #{energy_forward.1} parent=5 // pred_fallthru
      _
    %p162 = scmp.le.s32.totalorder 1, %s10
    %p163 = scmp.lt.s32.totalorder %s10, 3
    %p164 = pnand %p162, %p163
    %p165 = pneg %p164
    // Predicated region
    $region33: #{energy_forward.1} parent=5 // pred_check
      _
    $region34: #{energy_forward.1} parent=5 // pred_check_branch
      %167 = sbr.rel (%p164) target = $region36
    $region35: #{energy_forward.1} parent=5 // pred_region
      %s168 = ssub.s32 %s10, 1
      %s169 = smul.u32 16, %s15
      %p170 = scmp.lt.s32.totalorder %s169, 31
      %s171 = scalar_select %p170, %s169, 31
      %s172 = smul.addr %s171, 8
      %s173 = scalar_lea.vmem %s0, %s172
      %p174 = pneg %p36
      %p175 = pneg %p33
      %p176 = pneg %p57
      %p177 = pneg %p54
      %p178 = pneg %p78
      %p179 = pneg %p75
      %p180 = pneg %p99
      %p181 = pneg %p96
      %p182 = pneg %p125
      %p183 = pneg %p122
      %p184 = scmp.lt.s32.totalorder %s15, 1
      %s185 = scalar_select %p184, %s15, 1
      %s186 = scalar_lea.vmem %s4, %s185
      %s187 = smul.u32 16, %s15
      %p188 = scmp.lt.s32.totalorder %s187, 31
      %s189 = scalar_select %p188, %s187, 31
      %s190 = smul.addr %s189, 8
      %s191 = scalar_lea.vmem %s0, %s190
      %s192 = smul.u32 16, %s15
      %p193 = scmp.lt.s32.totalorder %s15, 1
      %s194 = scalar_select %p193, %s15, 1
      %s195 = scalar_lea.vmem %s4, %s194
      %v196 = vld [vmem:[%s191] sm:$0xff]
      %v197 = vld [vmem:[%s191 + $0x8] sm:$0xff]
      %v198 = vld [vmem:[%s191 + $0x10] sm:$0xff]
      %v199 = vld [vmem:[%s191 + $0x18] sm:$0xff]
      %v200 = vld [vmem:[%s191 + $0x20] sm:$0xff]
      %v201 = vld [vmem:[%s191 + $0x28] sm:$0xff]
      %v202 = vld [vmem:[%s191 + $0x30] sm:$0xff]
      %v203 = vld [vmem:[%s191 + $0x38] sm:$0xff]
      %v204 = vld [vmem:[%s191 + $0x40] sm:$0xff]
      %v205 = vld [vmem:[%s191 + $0x48] sm:$0xff]
      %v206 = vld [vmem:[%s191 + $0x50] sm:$0xff]
      %v207 = vld [vmem:[%s191 + $0x58] sm:$0xff]
      %v208 = vld [vmem:[%s191 + $0x60] sm:$0xff]
      %v209 = vld [vmem:[%s191 + $0x68] sm:$0xff]
      %v210 = vld [vmem:[%s191 + $0x70] sm:$0xff]
      %v211 = vld [vmem:[%s191 + $0x78] sm:$0xff]
      %v212 = vld [vmem:[%s1] sm:$0xff]
      %v213 = vld [vmem:[%s1 + $0x8] sm:$0xff]
      %v214 = vld [vmem:[%s1 + $0x10] sm:$0xff]
      %v215 = vld [vmem:[%s1 + $0x18] sm:$0xff]
      %v216 = vld [vmem:[%s1 + $0x20] sm:$0xff]
      %v217 = vld [vmem:[%s1 + $0x28] sm:$0xff]
      %v218 = vld [vmem:[%s1 + $0x30] sm:$0xff]
      %v219 = vld [vmem:[%s1 + $0x38] sm:$0xff]
      %v220 = vld [vmem:[%s1 + $0x40] sm:$0xff]
      %v221 = vld [vmem:[%s1 + $0x48] sm:$0xff]
      %v222 = vld [vmem:[%s1 + $0x50] sm:$0xff]
      %v223 = vld [vmem:[%s1 + $0x58] sm:$0xff]
      %v224 = vld [vmem:[%s2] sm:$0x1]
      %v226 = vlaneseq
      %v227 = vshrl.u32 %v226, 7
      %v228 = vsub.s32 0, %v227
      %v229 = vrot.slane %v224, %v228
      %vm231 = vcmask 785408
      %v233 = vsel %vm231, %v196, 0
      %v236 = vsel %vm231, %v197, 0
      %v239 = vsel %vm231, %v198, 0
      %v242 = vsel %vm231, %v199, 0
      %v245 = vsel %vm231, %v200, 0
      %v248 = vsel %vm231, %v201, 0
      %v251 = vsel %vm231, %v202, 0
      %v254 = vsel %vm231, %v203, 0
      %v257 = vsel %vm231, %v204, 0
      %v260 = vsel %vm231, %v205, 0
      %v263 = vsel %vm231, %v206, 0
      %v266 = vsel %vm231, %v207, 0
      %v269 = vsel %vm231, %v208, 0
      %v272 = vsel %vm231, %v209, 0
      %v275 = vsel %vm231, %v210, 0
      %v278 = vsel %vm231, %v211, 0
      %280 = vmatprep.subr.mxu0 0.0
      %281 = vmatpush1.msra.mxu0 0.0
      %282 = vmatprep.subr.mxu0 0.0
      %283 = vmatpush1.msra.mxu0 0.0
      %284 = vmatprep.subr.mxu0 0.0
      %285 = vmatpush1.msra.mxu0 0.0
      %286 = vmatprep.subr.mxu0 0.0
      %287 = vmatpush1.msra.mxu0 0.0
      %288 = vmatprep.subr.mxu0 0.0
      %289 = vmatpush1.msra.mxu0 %v223
      %290 = vmatprep.subr.mxu0 0.0
      %291 = vmatpush1.msra.mxu0 %v222
      %292 = vmatprep.subr.mxu0 0.0
      %293 = vmatpush1.msra.mxu0 %v221
      %294 = vmatprep.subr.mxu0 0.0
      %295 = vmatpush1.msra.mxu0 %v220
      %296 = vmatprep.subr.mxu0 0.0
      %297 = vmatpush1.msra.mxu0 %v219
      %298 = vmatprep.subr.mxu0 0.0
      %299 = vmatpush1.msra.mxu0 %v218
      %300 = vmatprep.subr.mxu0 0.0
      %301 = vmatpush1.msra.mxu0 %v217
      %302 = vmatprep.subr.mxu0 0.0
      %303 = vmatpush1.msra.mxu0 %v216
      %304 = vmatprep.subr.mxu0 0.0
      %305 = vmatpush1.msra.mxu0 %v215
      %306 = vmatprep.subr.mxu0 0.0
      %307 = vmatpush1.msra.mxu0 %v214
      %308 = vmatprep.subr.mxu0 0.0
      %309 = vmatpush1.msra.mxu0 %v213
      %310 = vmatprep.subr.mxu0 0.0
      %311 = vmatpush1.msra.mxu0 %v212
      %312 = vmatprep.subr.mxu0 0.0
      %313 = vmatpush2.msra.mxu0 0.0
      %314 = vmatprep.subr.mxu0 0.0
      %315 = vmatpush2.msra.mxu0 0.0
      %316 = vmatprep.subr.mxu0 0.0
      %317 = vmatpush2.msra.mxu0 0.0
      %318 = vmatprep.subr.mxu0 0.0
      %319 = vmatpush2.msra.mxu0 0.0
      %320 = vmatprep.subr.mxu0 0.0
      %321 = vmatpush2.msra.mxu0 0.0
      %322 = vmatprep.subr.mxu0 0.0
      %323 = vmatpush2.msra.mxu0 0.0
      %324 = vmatprep.subr.mxu0 0.0
      %325 = vmatpush2.msra.mxu0 0.0
      %326 = vmatprep.subr.mxu0 0.0
      %327 = vmatpush2.msra.mxu0 0.0
      %328 = vmatprep.subr.mxu0 0.0
      %329 = vmatpush2.msra.mxu0 0.0
      %330 = vmatprep.subr.mxu0 0.0
      %331 = vmatpush2.msra.mxu0 0.0
      %332 = vmatprep.subr.mxu0 0.0
      %333 = vmatpush2.msra.mxu0 0.0
      %334 = vmatprep.subr.mxu0 0.0
      %335 = vmatpush2.msra.mxu0 0.0
      %336 = vmatprep.subr.mxu0 0.0
      %337 = vmatpush2.msra.mxu0 0.0
      %338 = vmatprep.subr.mxu0 0.0
      %339 = vmatpush2.msra.mxu0 0.0
      %340 = vmatprep.subr.mxu0 0.0
      %341 = vmatpush2.msra.mxu0 0.0
      %342 = vmatprep.subr.mxu0 0.0
      %343 = vmatpush2.msra.mxu0 0.0
      %344 = vmatprep.mubr.f32.mxu0 0.0
      %345 = vmatmul.mubr.f32.gmra.mxu0 %v233
      %v346 = vpop.f32.mrf.mxu0
      %v347 = vadd.f32 %v229, %v346
      %v348 = vpop.f32.mrf.mxu0
      %349 = vmatprep.mubr.f32.mxu0 0.0
      %350 = vmatmul.mubr.f32.gmra.mxu0 %v236
      %v351 = vpop.f32.mrf.mxu0
      %v352 = vadd.f32 %v229, %v351
      %v353 = vpop.f32.mrf.mxu0
      %354 = vmatprep.mubr.f32.mxu0 0.0
      %355 = vmatmul.mubr.f32.gmra.mxu0 %v239
      %v356 = vpop.f32.mrf.mxu0
      %v357 = vadd.f32 %v229, %v356
      %v358 = vpop.f32.mrf.mxu0
      %359 = vmatprep.mubr.f32.mxu0 0.0
      %360 = vmatmul.mubr.f32.gmra.mxu0 %v242
      %v361 = vpop.f32.mrf.mxu0
      %v362 = vadd.f32 %v229, %v361
      %v363 = vpop.f32.mrf.mxu0
      %364 = vmatprep.mubr.f32.mxu0 0.0
      %365 = vmatmul.mubr.f32.gmra.mxu0 %v245
      %v366 = vpop.f32.mrf.mxu0
      %v367 = vadd.f32 %v229, %v366
      %v368 = vpop.f32.mrf.mxu0
      %369 = vmatprep.mubr.f32.mxu0 0.0
      %370 = vmatmul.mubr.f32.gmra.mxu0 %v248
      %v371 = vpop.f32.mrf.mxu0
      %v372 = vadd.f32 %v229, %v371
      %v373 = vpop.f32.mrf.mxu0
      %374 = vmatprep.mubr.f32.mxu0 0.0
      %375 = vmatmul.mubr.f32.gmra.mxu0 %v251
      %v376 = vpop.f32.mrf.mxu0
      %v377 = vadd.f32 %v229, %v376
      %v378 = vpop.f32.mrf.mxu0
      %379 = vmatprep.mubr.f32.mxu0 0.0
      %380 = vmatmul.mubr.f32.gmra.mxu0 %v254
      %v381 = vpop.f32.mrf.mxu0
      %v382 = vadd.f32 %v229, %v381
      %v383 = vpop.f32.mrf.mxu0
      %384 = vmatprep.mubr.f32.mxu0 0.0
      %385 = vmatmul.mubr.f32.gmra.mxu0 %v257
      %v386 = vpop.f32.mrf.mxu0
      %v387 = vadd.f32 %v229, %v386
      %v388 = vpop.f32.mrf.mxu0
      %389 = vmatprep.mubr.f32.mxu0 0.0
      %390 = vmatmul.mubr.f32.gmra.mxu0 %v260
      %v391 = vpop.f32.mrf.mxu0
      %v392 = vadd.f32 %v229, %v391
      %v393 = vpop.f32.mrf.mxu0
      %394 = vmatprep.mubr.f32.mxu0 0.0
      %395 = vmatmul.mubr.f32.gmra.mxu0 %v263
      %v396 = vpop.f32.mrf.mxu0
      %v397 = vadd.f32 %v229, %v396
      %v398 = vpop.f32.mrf.mxu0
      %399 = vmatprep.mubr.f32.mxu0 0.0
      %400 = vmatmul.mubr.f32.gmra.mxu0 %v266
      %v401 = vpop.f32.mrf.mxu0
      %v402 = vadd.f32 %v229, %v401
      %v403 = vpop.f32.mrf.mxu0
      %404 = vmatprep.mubr.f32.mxu0 0.0
      %405 = vmatmul.mubr.f32.gmra.mxu0 %v269
      %v406 = vpop.f32.mrf.mxu0
      %v407 = vadd.f32 %v229, %v406
      %v408 = vpop.f32.mrf.mxu0
      %409 = vmatprep.mubr.f32.mxu0 0.0
      %410 = vmatmul.mubr.f32.gmra.mxu0 %v272
      %v411 = vpop.f32.mrf.mxu0
      %v412 = vadd.f32 %v229, %v411
      %v413 = vpop.f32.mrf.mxu0
      %414 = vmatprep.mubr.f32.mxu0 0.0
      %415 = vmatmul.mubr.f32.gmra.mxu0 %v275
      %v416 = vpop.f32.mrf.mxu0
      %v417 = vadd.f32 %v229, %v416
      %v418 = vpop.f32.mrf.mxu0
      %419 = vmatprep.mubr.f32.mxu0 0.0
      %420 = vmatmul.mubr.f32.gmra.mxu0 %v278
      %v421 = vpop.f32.mrf.mxu0
      %v422 = vadd.f32 %v229, %v421
      %v423 = vpop.f32.mrf.mxu0
      %424 = vdwg.mxu0
      %v425 = vmax.f32 %v347, 0.0
      %v426 = vmax.f32 %v352, 0.0
      %v427 = vmax.f32 %v357, 0.0
      %v428 = vmax.f32 %v362, 0.0
      %v429 = vmax.f32 %v367, 0.0
      %v430 = vmax.f32 %v372, 0.0
      %v431 = vmax.f32 %v377, 0.0
      %v432 = vmax.f32 %v382, 0.0
      %v433 = vmax.f32 %v387, 0.0
      %v434 = vmax.f32 %v392, 0.0
      %v435 = vmax.f32 %v397, 0.0
      %v436 = vmax.f32 %v402, 0.0
      %v437 = vmax.f32 %v407, 0.0
      %v438 = vmax.f32 %v412, 0.0
      %v439 = vmax.f32 %v417, 0.0
      %v440 = vmax.f32 %v422, 0.0
      %v441 = vld [vmem:[%s3] sm:$0x1]
      %v443 = vlaneseq
      %v444 = vshrl.u32 %v443, 7
      %v445 = vsub.s32 0, %v444
      %v446 = vrot.slane %v441, %v445
      %v448 = vmul.f32 %v425, %v446
      %v449 = vmul.f32 %v426, %v446
      %v450 = vmul.f32 %v427, %v446
      %v451 = vmul.f32 %v428, %v446
      %v452 = vmul.f32 %v429, %v446
      %v453 = vmul.f32 %v430, %v446
      %v454 = vmul.f32 %v431, %v446
      %v455 = vmul.f32 %v432, %v446
      %v456 = vmul.f32 %v433, %v446
      %v457 = vmul.f32 %v434, %v446
      %v458 = vmul.f32 %v435, %v446
      %v459 = vmul.f32 %v436, %v446
      %v460 = vmul.f32 %v437, %v446
      %v461 = vmul.f32 %v438, %v446
      %v462 = vmul.f32 %v439, %v446
      %v463 = vmul.f32 %v440, %v446
      %vm464 = vcmask 654336
      %v465 = vsel %vm464, %v448, 0.0
      %466 = vadd.xlane.f32.xlu0 %v465
      %v467 = vpop.xlane.xlu0 %466
      %v468 = vsel %vm464, %v449, 0.0
      %469 = vadd.xlane.f32.xlu0 %v468
      %v470 = vpop.xlane.xlu0 %469
      %v471 = vsel %vm464, %v450, 0.0
      %472 = vadd.xlane.f32.xlu0 %v471
      %v473 = vpop.xlane.xlu0 %472
      %v474 = vsel %vm464, %v451, 0.0
      %475 = vadd.xlane.f32.xlu0 %v474
      %v476 = vpop.xlane.xlu0 %475
      %v477 = vsel %vm464, %v452, 0.0
      %478 = vadd.xlane.f32.xlu0 %v477
      %v479 = vpop.xlane.xlu0 %478
      %v480 = vsel %vm464, %v453, 0.0
      %481 = vadd.xlane.f32.xlu0 %v480
      %v482 = vpop.xlane.xlu0 %481
      %v483 = vsel %vm464, %v454, 0.0
      %484 = vadd.xlane.f32.xlu0 %v483
      %v485 = vpop.xlane.xlu0 %484
      %v486 = vsel %vm464, %v455, 0.0
      %487 = vadd.xlane.f32.xlu0 %v486
      %v488 = vpop.xlane.xlu0 %487
      %v489 = vsel %vm464, %v456, 0.0
      %490 = vadd.xlane.f32.xlu0 %v489
      %v491 = vpop.xlane.xlu0 %490
      %v492 = vsel %vm464, %v457, 0.0
      %493 = vadd.xlane.f32.xlu0 %v492
      %v494 = vpop.xlane.xlu0 %493
      %v495 = vsel %vm464, %v458, 0.0
      %496 = vadd.xlane.f32.xlu0 %v495
      %v497 = vpop.xlane.xlu0 %496
      %v498 = vsel %vm464, %v459, 0.0
      %499 = vadd.xlane.f32.xlu0 %v498
      %v500 = vpop.xlane.xlu0 %499
      %v501 = vsel %vm464, %v460, 0.0
      %502 = vadd.xlane.f32.xlu0 %v501
      %v503 = vpop.xlane.xlu0 %502
      %v504 = vsel %vm464, %v461, 0.0
      %505 = vadd.xlane.f32.xlu0 %v504
      %v506 = vpop.xlane.xlu0 %505
      %v507 = vsel %vm464, %v462, 0.0
      %508 = vadd.xlane.f32.xlu0 %v507
      %v509 = vpop.xlane.xlu0 %508
      %v510 = vsel %vm464, %v463, 0.0
      %511 = vadd.xlane.f32.xlu0 %v510
      %v512 = vpop.xlane.xlu0 %511
      %v529 = vlaneseq
      %v530 = vand.u32 %v529, 127
      %v531 = vlaneseq
      %v532 = vshrl.u32 %v531, 7
      %v533 = vsub.s32 %v530, %v532
      %v534 = vrot.slane %v467, %v533
      %v535 = vadd.s32 %v530, 4294967288
      %v536 = vlaneseq
      %v537 = vshrl.u32 %v536, 7
      %v538 = vsub.s32 %v535, %v537
      %v539 = vrot.slane %v470, %v538
      %vm540 = vcmask 130112
      %v541 = vsel %vm540, %v539, %v534
      %v542 = vadd.s32 %v530, 4294967280
      %v543 = vlaneseq
      %v544 = vshrl.u32 %v543, 7
      %v545 = vsub.s32 %v542, %v544
      %v546 = vrot.slane %v473, %v545
      %vm547 = vcmask 195712
      %v548 = vsel %vm547, %v546, %v541
      %v549 = vadd.s32 %v530, 4294967272
      %v550 = vlaneseq
      %v551 = vshrl.u32 %v550, 7
      %v552 = vsub.s32 %v549, %v551
      %v553 = vrot.slane %v476, %v552
      %vm554 = vcmask 261312
      %v555 = vsel %vm554, %v553, %v548
      %v556 = vadd.s32 %v530, 4294967264
      %v557 = vlaneseq
      %v558 = vshrl.u32 %v557, 7
      %v559 = vsub.s32 %v556, %v558
      %v560 = vrot.slane %v479, %v559
      %vm561 = vcmask 326912
      %v562 = vsel %vm561, %v560, %v555
      %v563 = vadd.s32 %v530, 4294967256
      %v564 = vlaneseq
      %v565 = vshrl.u32 %v564, 7
      %v566 = vsub.s32 %v563, %v565
      %v567 = vrot.slane %v482, %v566
      %vm568 = vcmask 392512
      %v569 = vsel %vm568, %v567, %v562
      %v570 = vadd.s32 %v530, 4294967248
      %v571 = vlaneseq
      %v572 = vshrl.u32 %v571, 7
      %v573 = vsub.s32 %v570, %v572
      %v574 = vrot.slane %v485, %v573
      %vm575 = vcmask 458112
      %v576 = vsel %vm575, %v574, %v569
      %v577 = vadd.s32 %v530, 4294967240
      %v578 = vlaneseq
      %v579 = vshrl.u32 %v578, 7
      %v580 = vsub.s32 %v577, %v579
      %v581 = vrot.slane %v488, %v580
      %vm582 = vcmask 523712
      %v583 = vsel %vm582, %v581, %v576
      %v584 = vadd.s32 %v530, 4294967232
      %v585 = vlaneseq
      %v586 = vshrl.u32 %v585, 7
      %v587 = vsub.s32 %v584, %v586
      %v588 = vrot.slane %v491, %v587
      %vm589 = vcmask 589312
      %v590 = vsel %vm589, %v588, %v583
      %v591 = vadd.s32 %v530, 4294967224
      %v592 = vlaneseq
      %v593 = vshrl.u32 %v592, 7
      %v594 = vsub.s32 %v591, %v593
      %v595 = vrot.slane %v494, %v594
      %vm596 = vcmask 654912
      %v597 = vsel %vm596, %v595, %v590
      %v598 = vadd.s32 %v530, 4294967216
      %v599 = vlaneseq
      %v600 = vshrl.u32 %v599, 7
      %v601 = vsub.s32 %v598, %v600
      %v602 = vrot.slane %v497, %v601
      %vm603 = vcmask 720512
      %v604 = vsel %vm603, %v602, %v597
      %v605 = vadd.s32 %v530, 4294967208
      %v606 = vlaneseq
      %v607 = vshrl.u32 %v606, 7
      %v608 = vsub.s32 %v605, %v607
      %v609 = vrot.slane %v500, %v608
      %vm610 = vcmask 786112
      %v611 = vsel %vm610, %v609, %v604
      %v612 = vadd.s32 %v530, 4294967200
      %v613 = vlaneseq
      %v614 = vshrl.u32 %v613, 7
      %v615 = vsub.s32 %v612, %v614
      %v616 = vrot.slane %v503, %v615
      %vm617 = vcmask 851712
      %v618 = vsel %vm617, %v616, %v611
      %v619 = vadd.s32 %v530, 4294967192
      %v620 = vlaneseq
      %v621 = vshrl.u32 %v620, 7
      %v622 = vsub.s32 %v619, %v621
      %v623 = vrot.slane %v506, %v622
      %vm624 = vcmask 917312
      %v625 = vsel %vm624, %v623, %v618
      %v626 = vadd.s32 %v530, 4294967184
      %v627 = vlaneseq
      %v628 = vshrl.u32 %v627, 7
      %v629 = vsub.s32 %v626, %v628
      %v630 = vrot.slane %v509, %v629
      %vm631 = vcmask 982912
      %v632 = vsel %vm631, %v630, %v625
      %v633 = vadd.s32 %v530, 4294967176
      %v634 = vlaneseq
      %v635 = vshrl.u32 %v634, 7
      %v636 = vsub.s32 %v633, %v635
      %v637 = vrot.slane %v512, %v636
      %vm638 = vcmask 1048512
      %v639 = vsel %vm638, %v637, %v632
      %641 = vst [vmem:[%s195] sm:$0x1] %v639
      %p642 = scmp.lt.s32.totalorder %s15, 1
      %s643 = scalar_select %p642, %s15, 1
      %s644 = scalar_lea.vmem %s4, %s643
      // Predicated region
      $region37: #{energy_forward.1} parent=35 // pred_check
        %p645 = pneg %p122
      $region38: #{energy_forward.1} parent=35 // pred_check_branch
        %647 = sbr.rel (%p645) target = $region40
      $region39: #{energy_forward.1} parent=35 // pred_region
        _
      $region40: #{energy_forward.1} parent=35 // pred_fallthru
        _
    $region36: #{energy_forward.1} parent=5 // pred_fallthru
      _
    %p648 = scmp.le.s32.totalorder 2, %s10
    // Predicated region
    $region41: #{energy_forward.1} parent=5 // pred_check
      %p649 = pneg %p648
    $region42: #{energy_forward.1} parent=5 // pred_check_branch
      %651 = sbr.rel (%p649) target = $region44
    $region43: #{energy_forward.1} parent=5 // pred_region
      %s652 = ssub.s32 %s10, 2
      // Predicated region
      $region45: #{energy_forward.1} parent=43 // pred_check
        %p653 = pneg %p128
      $region46: #{energy_forward.1} parent=43 // pred_check_branch
        %655 = sbr.rel (%p653) target = $region48
      $region47: #{energy_forward.1} parent=43 // pred_region
        %p656 = scmp.lt.s32.totalorder %s16, 1
        %s657 = scalar_select %p656, %s16, 1
        %s658 = scalar_lea.vmem %s4, %s657
      $region48: #{energy_forward.1} parent=43 // pred_fallthru
        _
    $region44: #{energy_forward.1} parent=5 // pred_fallthru
      _
  $region6: #{energy_forward.1} parent=0 // loop_footer
    %s14 = sadd.s32 1, %s10
  $region7: #{energy_forward.1} parent=0 // loop_footer_branch
    %9 = sbr.rel target = $region3
  $region8: #{energy_forward.1} parent=0 // loop_exit
    _

</llo_original>
